<compile_context>
chip_gen: v5e
topology: v5e:2x2
jax: 0.10.0
libtpu: 0.0.40
codegen_flags: <defaults>
</compile_context>

<pallas_src>
import jax
import jax.numpy as jnp
from jax.experimental import pallas as pl
from jax.experimental.pallas import tpu as pltpu

LANES = 128  # vreg lane width


def logreg_kernel(params_ref, x_ref, o_ref):
    # params_ref: SMEM (2,) f32 = [w1 - w0, b1 - b0]
    # x_ref:      VMEM (TILE_R, 128) f32, lane-dense batch elements
    # o_ref:      VMEM (2, TILE_R, 128) f32, class-major probabilities
    w_diff = params_ref[0]
    b_diff = params_ref[1]

    # Logit difference via broadcast MAC on the VPU (no MXU involvement).
    z = x_ref[...] * w_diff + b_diff

    # softmax over 2 classes == sigmoid(logit difference); single EUP exp per elem.
    p1 = pl.reciprocal(1.0 + jnp.exp(-z), approx=False)  # exact; approx=True also valid

    o_ref[1, :, :] = p1
    o_ref[0, :, :] = 1.0 - p1


def logistic_regression(x, weight, bias, *, tile_rows=512):
    """x: (N, 1) f32, weight: (2, 1) f32, bias: (2,) f32 -> (N, 2) f32 softmax probs."""
    n, in_f = x.shape
    out_f = weight.shape[0]
    assert in_f == 1 and out_f == 2, "module is Linear(1 -> 2) + 2-class softmax"

    # Fold the 2-class linear layer into the logit-difference scalars (wrapper-side).
    w_diff = weight[1, 0] - weight[0, 0]
    b_diff = bias[1] - bias[0]
    params = jnp.stack([w_diff, b_diff]).astype(jnp.float32)  # (2,) -> SMEM

    # Lane-dense layout: pad N up and reshape so N runs along the 128-lane axis.
    rows_raw = pl.cdiv(n, LANES)
    if rows_raw >= tile_rows:
        tile_r = tile_rows
    else:
        tile_r = ((rows_raw + 7) // 8) * 8          # sublane multiple
    rows = ((rows_raw + tile_r - 1) // tile_r) * tile_r
    padded = rows * LANES

    xf = x.reshape(-1).astype(jnp.float32)
    if padded > n:
        xf = jnp.pad(xf, (0, padded - n))
    x2d = xf.reshape(rows, LANES)

    out = pl.pallas_call(
        logreg_kernel,
        out_shape=jax.ShapeDtypeStruct((out_f, rows, LANES), jnp.float32),
        grid=(rows // tile_r,),
        in_specs=[
            pl.BlockSpec(memory_space=pltpu.MemorySpace.SMEM),   # folded scalars
            pl.BlockSpec((tile_r, LANES), lambda i: (i, 0)),     # lane-dense x tile
        ],
        out_specs=pl.BlockSpec((out_f, tile_r, LANES), lambda i: (0, i, 0)),
        compiler_params=pltpu.CompilerParams(
            dimension_semantics=("parallel",),  # shards row tiles across TCs on v7x
        ),
    )(params, x2d)

    # Back to the PyTorch-facing layout: (N, 2) row-major probabilities.
    return out.reshape(out_f, padded)[:, :n].T


if __name__ == "__main__":
    key = jax.random.PRNGKey(0)
    kx, kw, kb = jax.random.split(key, 3)

    N, IN_F, OUT_F = 8, 1, 2
    # PyTorch Linear init: U(-1/sqrt(in), 1/sqrt(in)) — reproduced deterministically.
    bound = 1.0 / (IN_F ** 0.5)
    x = jax.random.normal(kx, (N, IN_F), dtype=jnp.float32)
    weight = jax.random.uniform(kw, (OUT_F, IN_F), minval=-bound, maxval=bound, dtype=jnp.float32)
    bias = jax.random.uniform(kb, (OUT_F,), minval=-bound, maxval=bound, dtype=jnp.float32)

    out = logistic_regression(x, weight, bias)
    out = jax.block_until_ready(out)

    # Reference: same math as torch (linear + softmax over the class dim).
    ref_logits = x @ weight.T + bias[None, :]
    ref = jax.nn.softmax(ref_logits, axis=-1)
    assert out.shape == (N, OUT_F)
    assert jnp.allclose(out, ref, atol=1e-5, rtol=1e-5)

    print("KERNEL_OK")
</pallas_src>

<mosaic_0001>
module attributes {stable_mosaic.version = 11 : i64} {
  func.func @logreg_kernel(%arg0: i32, %arg1: memref<2xf32, #tpu.memory_space<smem>>, %arg2: memref<8x128xf32, #tpu.memory_space<vmem>>, %arg3: memref<2x8x128xf32, #tpu.memory_space<vmem>>) attributes {dimension_semantics = [#tpu.dimension_semantics<parallel>], iteration_bounds = array<i64: 1>, scalar_prefetch = 0 : i64, scratch_operands = 0 : i64, tpu.core_type = #tpu.core_type<tc>, window_params = [{transform_indices = @transform_0, window_bounds = array<i64: 2>}, {transform_indices = @transform_1, window_bounds = array<i64: 8, 128>}, {transform_indices = @transform_2, window_bounds = array<i64: 2, 8, 128>}]} {
    %c0 = arith.constant 0 : index
    %0 = memref.load %arg1[%c0] : memref<2xf32, #tpu.memory_space<smem>>
    %c1 = arith.constant 1 : index
    %1 = memref.load %arg1[%c1] : memref<2xf32, #tpu.memory_space<smem>>
    %c0_0 = arith.constant 0 : index
    %c0_1 = arith.constant 0 : index
    %2 = vector.load %arg2[%c0_0, %c0_1] : memref<8x128xf32, #tpu.memory_space<vmem>>, vector<8x128xf32>
    %3 = vector.broadcast %0 : f32 to vector<8x128xf32>
    %4 = arith.mulf %2, %3 : vector<8x128xf32>
    %5 = vector.broadcast %1 : f32 to vector<8x128xf32>
    %6 = arith.addf %4, %5 : vector<8x128xf32>
    %cst = arith.constant 0.000000e+00 : f32
    %7 = vector.broadcast %cst : f32 to vector<8x128xf32>
    %8 = arith.subf %7, %6 : vector<8x128xf32>
    %9 = math.exp %8 : vector<8x128xf32>
    %cst_2 = arith.constant 1.000000e+00 : f32
    %10 = vector.broadcast %cst_2 : f32 to vector<8x128xf32>
    %11 = arith.addf %10, %9 : vector<8x128xf32>
    %12 = tpu.reciprocal %11 : vector<8x128xf32> -> vector<8x128xf32>
    %c1_3 = arith.constant 1 : index
    %c0_4 = arith.constant 0 : index
    %c0_5 = arith.constant 0 : index
    %13 = vector.load %arg3[%c1_3, %c0_4, %c0_5] : memref<2x8x128xf32, #tpu.memory_space<vmem>>, vector<1x8x128xf32>
    %14 = vector.shape_cast %13 : vector<1x8x128xf32> to vector<8x128xf32>
    %15 = vector.shape_cast %12 : vector<8x128xf32> to vector<1x8x128xf32>
    tpu.vector_store %arg3[%c1_3, %c0_4, %c0_5], %15 {strides = array<i32>} : memref<2x8x128xf32, #tpu.memory_space<vmem>>, vector<1x8x128xf32>,
    %cst_6 = arith.constant 1.000000e+00 : f32
    %16 = vector.broadcast %cst_6 : f32 to vector<8x128xf32>
    %17 = arith.subf %16, %12 : vector<8x128xf32>
    %c0_7 = arith.constant 0 : index
    %c0_8 = arith.constant 0 : index
    %c0_9 = arith.constant 0 : index
    %18 = vector.load %arg3[%c0_7, %c0_8, %c0_9] : memref<2x8x128xf32, #tpu.memory_space<vmem>>, vector<1x8x128xf32>
    %19 = vector.shape_cast %18 : vector<1x8x128xf32> to vector<8x128xf32>
    %20 = vector.shape_cast %17 : vector<8x128xf32> to vector<1x8x128xf32>
    tpu.vector_store %arg3[%c0_7, %c0_8, %c0_9], %20 {strides = array<i32>} : memref<2x8x128xf32, #tpu.memory_space<vmem>>, vector<1x8x128xf32>,
    return
  }
  func.func @transform_0(%arg0: i32) -> i32 {
    %c0_i32 = arith.constant 0 : i32
    %c0_i32_0 = arith.constant 0 : i32
    return %c0_i32 : i32
  }
  func.func @transform_1(%arg0: i32) -> (i32, i32) {
    %c0_i32 = arith.constant 0 : i32
    %c0_i32_0 = arith.constant 0 : i32
    return %arg0, %c0_i32 : i32, i32
  }
  func.func @transform_2(%arg0: i32) -> (i32, i32, i32) {
    %c0_i32 = arith.constant 0 : i32
    %c0_i32_0 = arith.constant 0 : i32
    %c0_i32_1 = arith.constant 0 : i32
    return %c0_i32, %arg0, %c0_i32_0 : i32, i32, i32
  }
}

</mosaic_0001>

<llo_original>
// kernel: tpu_custom_call.1
$region0: #{tpu_custom_call.1}
  #allocation0 [shape = 'u32[]', space=smem, size = 0x4, offset = 0x4, fixed_abs, tag = 'smem constant byte address 0x4 - core index']
  #allocation1 [shape = 'u32[72,128]{1,0:T(1,128)}', space=vmem, size = 0x9000, scoped, tag = 'internal scratch']
  %s0 = inlined_call_operand.hbm [shape: f32[2], index: 0, kind: input, shape index: {}]
  %s1 = inlined_call_operand.hbm [shape: f32[8,128], index: 1, kind: input, shape index: {}]
  %s2 = inlined_call_operand.hbm [shape: f32[2,8,128], index: 2, kind: output, shape index: {}]
  %s3 = sld [smem:[#allocation0]]
  $region26: #{tpu_custom_call.1} parent=0
    _
  %s5 = ssub.s32 1, %s3
  %s6 = scalar_select 0, %s5, %s3
  $region1: #{tpu_custom_call.1} parent=0
    #allocation2 [shape = 'u8[512]{0}', space=smem, size = 0x200, scoped, tag = 'input window, operand 0, single buffered']
    #allocation3 [shape = 's32[1]{0}', space=sflag, size = 0x4, scoped, tag = 'scoped memory for tpu_custom_call.1']
    #allocation4 [shape = 's32[1]{0}', space=sflag, size = 0x4, scoped, tag = 'scoped memory for tpu_custom_call.1']
    #allocation5 [shape = 's32[1]{0}', space=sflag, size = 0x4, scoped, tag = 'scoped memory for tpu_custom_call.1']
    #allocation6 [shape = 'u8[4096]{0}', space=vmem, size = 0x1000, scoped, tag = 'input window, operand 1, single buffered']
    #allocation7 [shape = 'u8[8192]{0}', space=vmem, size = 0x2000, scoped, tag = 'output window, operand 0, single buffered']
    %7 = vsyncpa [#allocation5], 0
    %8 = vsyncpa [#allocation3], 0
    %9 = vsyncpa [#allocation4], 0
    // Predicated region
    $region2: #{tpu_custom_call.1} parent=1 // pred_check
      _
    $region3: #{tpu_custom_call.1} parent=1 // pred_check_branch
      %11 = sbr.rel (0) target = $region5
    $region4: #{tpu_custom_call.1} parent=1 // pred_region
      %13 = vsyncadd [#allocation5], 0
      %s15 = sshll.u32 %s0, 4
      %s16 = int_to_ptr.hbm [resolvable:$true] %s15
      %18 = dma.hbm_to_smem %s16, 16, [#allocation2], [#allocation5]
    $region5: #{tpu_custom_call.1} parent=1 // pred_fallthru
      _
    // Predicated region
    $region6: #{tpu_custom_call.1} parent=1 // pred_check
      _
    $region7: #{tpu_custom_call.1} parent=1 // pred_check_branch
      %20 = sbr.rel (0) target = $region9
    $region8: #{tpu_custom_call.1} parent=1 // pred_region
      %22 = vsyncadd [#allocation3], 0
      %s24 = sshll.u32 %s1, 4
      %s25 = int_to_ptr.hbm [resolvable:$true] %s24
      %s26 = sshll.u32 [#allocation6], 4
      %s27 = int_to_ptr.vmem [resolvable:$true] %s26
      %29 = dma.hbm_to_vmem [thread:$0]  %s25, 128, %s27, [#allocation3]
    $region9: #{tpu_custom_call.1} parent=1 // pred_fallthru
      _
    // Predicated region
    $region10: #{tpu_custom_call.1} parent=1 // pred_check
      _
    $region11: #{tpu_custom_call.1} parent=1 // pred_check_branch
      %31 = sbr.rel (0) target = $region13
    $region12: #{tpu_custom_call.1} parent=1 // pred_region
      %33 = dma.done [#allocation5], 16
    $region13: #{tpu_custom_call.1} parent=1 // pred_fallthru
      _
    // Predicated region
    $region14: #{tpu_custom_call.1} parent=1 // pred_check
      _
    $region15: #{tpu_custom_call.1} parent=1 // pred_check_branch
      %35 = sbr.rel (0) target = $region17
    $region16: #{tpu_custom_call.1} parent=1 // pred_region
      %37 = dma.done [#allocation3], 128
    $region17: #{tpu_custom_call.1} parent=1 // pred_fallthru
      _
    %38 = sfence
    %s39 = sld [smem:[#allocation2]]
    %s40 = sld [smem:[#allocation2 + $0x1]]
    %v41 = vld [vmem:[#allocation6] sm:$0xff]
    %v42 = vstv %s39
    %v43 = vmul.f32 %v41, %v42
    %v44 = vstv %s40
    %v45 = vadd.f32 %v43, %v44
    %v46 = vsub.f32 0.0, %v45
    %v47 = vmul.f32 %v46, 1.442695
    %v48 = vpow.pop %v47
    %v49 = vadd.f32 %v48, 1.0
    %v50 = vrcp.pop %v49
    %v51 = vmul.f32 %v49, %v50
    %v52 = vsub.f32 1.0, %v51
    %v53 = vmul.f32 %v50, %v52
    %v54 = vadd.f32 %v50, %v53
    %vm55 = vweird.f32 %v49
    %vm56 = vweird.f32 %v50
    %vm57 = vmor %vm55, %vm56
    %v58 = vsel %vm57, %v50, %v54
    %v59 = vand.u32 2147483647, %v49
    %vm60 = vcmp.eq.f32.partialorder %v59, 8.507059e+37
    %v61 = vand.u32 %v49, 2147483648
    %v62 = vor.u32 1.1754944e-38, %v61
    %v63 = vsel %vm60, %v62, %v58
    %s64 = scalar_lea.vmem [#allocation7], 8
    %65 = vst [vmem:[%s64] sm:$0xff] %v63
    %v66 = vsub.f32 1.0, %v63
    %67 = vst [vmem:[#allocation7] sm:$0xff] %v66
    // Predicated region
    $region18: #{tpu_custom_call.1} parent=1 // pred_check
      _
    $region19: #{tpu_custom_call.1} parent=1 // pred_check_branch
      %69 = sbr.rel (0) target = $region21
    $region20: #{tpu_custom_call.1} parent=1 // pred_region
      %71 = vsyncadd [#allocation4], 0
      %s72 = sshll.u32 [#allocation7], 4
      %s73 = int_to_ptr.vmem [resolvable:$true] %s72
      %s74 = sshll.u32 %s2, 4
      %s75 = int_to_ptr.hbm [resolvable:$true] %s74
      %80 = dma.vmem_to_hbm [thread:$0]  %s73, 256, %s75, [#allocation4], 128, 128, 8
    $region21: #{tpu_custom_call.1} parent=1 // pred_fallthru
      _
    // Predicated region
    $region22: #{tpu_custom_call.1} parent=1 // pred_check
      _
    $region23: #{tpu_custom_call.1} parent=1 // pred_check_branch
      %82 = sbr.rel (0) target = $region25
    $region24: #{tpu_custom_call.1} parent=1 // pred_region
      %84 = dma.done [#allocation4], 256
    $region25: #{tpu_custom_call.1} parent=1 // pred_fallthru
      _
    %85 = vsyncpa [#allocation3], 1
    %86 = vsyncpa [#allocation4], 1
    %87 = vsyncpa [#allocation5], 1

</llo_original>
